<compile_context>
chip_gen: v6e
topology: v6e:2x2x1
jax: 0.10.0
libtpu: 0.0.40
codegen_flags: <defaults>
</compile_context>

<pallas_src>
import functools

import numpy as np
import jax
import jax.numpy as jnp
from jax.experimental import pallas as pl
from jax.experimental.pallas import tpu as pltpu


# ----------------------------------------------------------------------------- #
# Hardware-aware sizing helpers
# ----------------------------------------------------------------------------- #
def _tpu_generation():
    """Best-effort TPU generation from device_kind (e.g. 'TPU v6e' -> 6)."""
    try:
        kind = jax.devices()[0].device_kind.lower()
    except Exception:
        return 0
    for g in (7, 6, 5, 4, 3):
        if f"v{g}" in kind:
            return g
    return 0


def _vmem_plan():
    """Return (tile_footprint_budget_bytes, vmem_limit_bytes) for this chip."""
    gen = _tpu_generation()
    try:
        cap = int(pltpu.get_tpu_info().vmem_capacity_bytes)
    except Exception:
        # v5e/v6e: 128 MiB physical; v7x (and unknown): be conservative at 64 MiB.
        cap = (128 << 20) if gen in (5, 6) else (64 << 20)
    # Leave headroom for Mosaic's own scratch and the pipelined output buffers:
    #   128 MiB -> limit 96 MiB, budget 80 MiB ; 64 MiB -> limit 48 MiB, budget 40 MiB.
    vmem_limit = min(cap * 3 // 4, cap - (16 << 20))
    tile_budget = vmem_limit * 5 // 6
    return tile_budget, vmem_limit


def _pick_tile_rows(n, d, in_itemsize, budget_bytes, max_rows=1024):
    """Largest sublane-aligned row tile whose footprint fits the VMEM budget.

    Footprint per row:
      * 2 inputs x 2 pipeline buffers x D x itemsize (use the larger of the two
        input itemsizes), plus
      * ~4 (rows, D) f32 in-kernel intermediates (scaled logits, shifted, exp,
        product) that Mosaic materializes in VMEM/vregs.
    max_rows=1024: measured HBM-roofline plateau is in the 512-1024-row region.
    """
    per_row_bytes = 2 * 2 * d * in_itemsize + 4 * d * 4
    tile = int(budget_bytes) // per_row_bytes
    tile = min(max(tile, 8), max_rows)
    if n >= 16:
        # Never collapse the grid to 1: keep >= 2 tiles so the "parallel" axis can
        # shard across v7x's two TensorCores (near-neutral on 1-TC v5e/v6e).
        tile = min(tile, (pl.cdiv(n, 2) // 8) * 8)
    tile = max(8, (tile // 8) * 8)
    if tile >= n:
        return n  # single full block (block shape == array shape is legal)
    return tile


# ----------------------------------------------------------------------------- #
# Kernel
# ----------------------------------------------------------------------------- #
def _distill_kernel(fast_exp, scale_ref, nrows_ref, s_ref, t_ref, o_ref):
    """scale_ref: SMEM (2,) f32 = [1/student_temp, 1/teacher_temp].
    nrows_ref: SMEM (1,) i32 = real row count (for masking the padded last tile).
    s_ref/t_ref: VMEM (tile_rows, D).  o_ref: VMEM (1, 1, 1) per-tile partial sum."""
    inv_s_temp = scale_ref[0]
    inv_t_temp = scale_ref[1]

    s = s_ref[...].astype(jnp.float32) * inv_s_temp   # student_output / student_temp
    t = t_ref[...].astype(jnp.float32) * inv_t_temp   # teacher_output / temp

    # Max-shift both: every exp argument is <= 0 (overflow-safe, incl. bf16 path).
    t_shift = t - jnp.max(t, axis=-1, keepdims=True)
    s_shift = s - jnp.max(s, axis=-1, keepdims=True)

    if fast_exp:
        # bf16 EUP path (v6e/v7x, bf16 inputs): halves transcendental-slot pressure.
        t_exp = jnp.exp(t_shift.astype(jnp.bfloat16)).astype(jnp.float32)
        s_exp = jnp.exp(s_shift.astype(jnp.bfloat16)).astype(jnp.float32)
    else:
        t_exp = jnp.exp(t_shift)
        s_exp = jnp.exp(s_shift)

    z_t = jnp.sum(t_exp, axis=-1, keepdims=True)                      # (rows, 1)
    s_lse = jnp.log(jnp.sum(s_exp, axis=-1, keepdims=True))           # (rows, 1)
    weighted = jnp.sum(t_exp * s_shift, axis=-1, keepdims=True)       # (rows, 1)

    # sum(-softmax(t) * log_softmax(s), -1) == lse(s) - sum(t_exp * s_shift) / Z_t
    if fast_exp:
        row_loss = s_lse - weighted * pl.reciprocal(z_t, approx=True)
    else:
        row_loss = s_lse - weighted / z_t                             # (rows, 1)

    # Mask rows past the real row count (last tile reads undefined OOB data) and
    # reduce to one scalar: the writeback is 4 bytes/step instead of a lane-sparse
    # (rows, 1) masked-store epilogue.  jnp.where is a select, so NaN/inf produced
    # from garbage padding rows cannot leak into the sum.
    rows = row_loss.shape[0]
    row_ids = (pl.program_id(0) * rows
               + jax.lax.broadcasted_iota(jnp.int32, (rows, 1), 0))
    valid = row_ids < nrows_ref[0]
    o_ref[...] = jnp.sum(jnp.where(valid, row_loss, 0.0)).reshape(1, 1, 1)


# ----------------------------------------------------------------------------- #
# Wrapper
# ----------------------------------------------------------------------------- #
def _distill_partial_sums(scales, nrows, student_output, teacher_output, fast_exp):
    n, d = student_output.shape
    itemsize = max(jnp.dtype(student_output.dtype).itemsize,
                   jnp.dtype(teacher_output.dtype).itemsize)
    tile_budget, vmem_limit = _vmem_plan()
    tile_rows = _pick_tile_rows(n, d, itemsize, tile_budget)
    grid = pl.cdiv(n, tile_rows)

    kernel = functools.partial(_distill_kernel, fast_exp)
    return pl.pallas_call(
        kernel,
        out_shape=jax.ShapeDtypeStruct((grid, 1, 1), jnp.float32),
        grid_spec=pltpu.PrefetchScalarGridSpec(
            num_scalar_prefetch=0,
            grid=(grid,),
            in_specs=[
                pl.BlockSpec(memory_space=pltpu.MemorySpace.SMEM),   # [1/Ts, 1/Tt]
                pl.BlockSpec(memory_space=pltpu.MemorySpace.SMEM),   # real row count
                pl.BlockSpec((tile_rows, d), lambda i: (i, 0)),      # student tile
                pl.BlockSpec((tile_rows, d), lambda i: (i, 0)),      # teacher tile
            ],
            out_specs=pl.BlockSpec((1, 1, 1), lambda i: (i, 0, 0)),  # per-tile sums
        ),
        compiler_params=pltpu.CompilerParams(
            dimension_semantics=("parallel",),        # independent tiles
            vmem_limit_bytes=int(vmem_limit),         # generation-aware
        ),
    )(scales, nrows, student_output, teacher_output)


class DistillLossMT:
    """JAX/Pallas port of DistillLoss_MT (forward pass only)."""

    def __init__(self, warmup_teacher_temp_epochs, nepochs, ncrops=2,
                 warmup_teacher_temp=0.07, teacher_temp=0.04, student_temp=0.1):
        self.student_temp = student_temp
        self.ncrops = ncrops
        self.teacher_temp_schedule = np.concatenate((
            np.linspace(warmup_teacher_temp, teacher_temp, warmup_teacher_temp_epochs),
            np.ones(nepochs - warmup_teacher_temp_epochs) * teacher_temp,
        ))

    def __call__(self, student_output, teacher_output, epoch):
        n, d = student_output.shape
        assert teacher_output.shape == (n, d)
        temp = float(self.teacher_temp_schedule[epoch])
        # Runtime SMEM scalars: same compiled kernel for every epoch / temperature.
        scales = jnp.array([1.0 / self.student_temp, 1.0 / temp], dtype=jnp.float32)
        nrows = jnp.array([n], dtype=jnp.int32)
        # bf16-EUP exp only on chips that have it AND when the caller already feeds
        # bf16 logits (so they accept bf16 precision); f32 inputs stay exact.
        fast_exp = (_tpu_generation() >= 6
                    and student_output.dtype == jnp.bfloat16
                    and teacher_output.dtype == jnp.bfloat16)
        partials = _distill_partial_sums(scales, nrows, student_output,
                                         teacher_output, fast_exp)
        return jnp.sum(partials) / n   # masked mean over real rows


def _reference(student_output, teacher_output, epoch, loss_mod):
    s = student_output / loss_mod.student_temp
    temp = loss_mod.teacher_temp_schedule[epoch]
    t_soft = jax.nn.softmax(teacher_output / temp, axis=-1)
    loss = jnp.sum(-t_soft * jax.nn.log_softmax(s, axis=-1), axis=-1)
    return loss.mean()


if __name__ == "__main__":
    key = jax.random.PRNGKey(0)
    k1, k2 = jax.random.split(key)

    # Small shapes: 20 samples (not a multiple of the 8-row tile -> exercises the
    # padded-row masking path and a multi-tile grid), 32-dim logits.
    N, D = 20, 32
    student_output = jax.random.normal(k1, (N, D), dtype=jnp.float32)
    teacher_output = jax.random.normal(k2, (N, D), dtype=jnp.float32)
    epoch = 3

    loss_mod = DistillLossMT(warmup_teacher_temp_epochs=5, nepochs=20, ncrops=2)

    result = loss_mod(student_output, teacher_output, epoch)
    result = jax.block_until_ready(result)

    ref = _reference(student_output, teacher_output, epoch, loss_mod)
    assert jnp.allclose(result, ref, rtol=1e-5, atol=1e-5), (result, ref)

    print("KERNEL_OK")
</pallas_src>

<mosaic_0001>
module attributes {stable_mosaic.version = 11 : i64} {
  func.func @_distill_kernel(%arg0: i32, %arg1: memref<2xf32, #tpu.memory_space<smem>>, %arg2: memref<1xi32, #tpu.memory_space<smem>>, %arg3: memref<8x32xf32, #tpu.memory_space<vmem>>, %arg4: memref<8x32xf32, #tpu.memory_space<vmem>>, %arg5: memref<1x1x1xf32, #tpu.memory_space<vmem>>) attributes {dimension_semantics = [#tpu.dimension_semantics<parallel>], iteration_bounds = array<i64: 3>, scalar_prefetch = 0 : i64, scratch_operands = 0 : i64, tpu.core_type = #tpu.core_type<tc>, window_params = [{transform_indices = @transform_0, window_bounds = array<i64: 2>}, {transform_indices = @transform_1, window_bounds = array<i64: 1>}, {transform_indices = @transform_2, window_bounds = array<i64: 8, 32>}, {transform_indices = @transform_3, window_bounds = array<i64: 8, 32>}, {transform_indices = @transform_4, window_bounds = array<i64: 1, 1, 1>}]} {
    %c0 = arith.constant 0 : index
    %0 = memref.load %arg1[%c0] : memref<2xf32, #tpu.memory_space<smem>>
    %c1 = arith.constant 1 : index
    %1 = memref.load %arg1[%c1] : memref<2xf32, #tpu.memory_space<smem>>
    %c0_0 = arith.constant 0 : index
    %c0_1 = arith.constant 0 : index
    %2 = vector.load %arg3[%c0_0, %c0_1] : memref<8x32xf32, #tpu.memory_space<vmem>>, vector<8x32xf32>
    %3 = vector.broadcast %0 : f32 to vector<8x32xf32>
    %4 = arith.mulf %2, %3 : vector<8x32xf32>
    %c0_2 = arith.constant 0 : index
    %c0_3 = arith.constant 0 : index
    %5 = vector.load %arg4[%c0_2, %c0_3] : memref<8x32xf32, #tpu.memory_space<vmem>>, vector<8x32xf32>
    %6 = vector.broadcast %1 : f32 to vector<8x32xf32>
    %7 = arith.mulf %5, %6 : vector<8x32xf32>
    %cst = arith.constant dense<0xFF800000> : vector<8xf32>
    %8 = vector.multi_reduction <maximumf>, %7, %cst [1] : vector<8x32xf32> to vector<8xf32>
    %9 = vector.shape_cast %8 : vector<8xf32> to vector<8x1xf32>
    %10 = vector.broadcast %9 : vector<8x1xf32> to vector<8x32xf32>
    %11 = arith.subf %7, %10 : vector<8x32xf32>
    %cst_4 = arith.constant dense<0xFF800000> : vector<8xf32>
    %12 = vector.multi_reduction <maximumf>, %4, %cst_4 [1] : vector<8x32xf32> to vector<8xf32>
    %13 = vector.shape_cast %12 : vector<8xf32> to vector<8x1xf32>
    %14 = vector.broadcast %13 : vector<8x1xf32> to vector<8x32xf32>
    %15 = arith.subf %4, %14 : vector<8x32xf32>
    %16 = math.exp %11 : vector<8x32xf32>
    %17 = math.exp %15 : vector<8x32xf32>
    %cst_5 = arith.constant dense<0.000000e+00> : vector<8xf32>
    %18 = vector.multi_reduction <add>, %16, %cst_5 [1] : vector<8x32xf32> to vector<8xf32>
    %19 = vector.shape_cast %18 : vector<8xf32> to vector<8x1xf32>
    %cst_6 = arith.constant dense<0.000000e+00> : vector<8xf32>
    %20 = vector.multi_reduction <add>, %17, %cst_6 [1] : vector<8x32xf32> to vector<8xf32>
    %21 = vector.shape_cast %20 : vector<8xf32> to vector<8x1xf32>
    %22 = math.log %21 : vector<8x1xf32>
    %23 = arith.mulf %16, %15 : vector<8x32xf32>
    %cst_7 = arith.constant dense<0.000000e+00> : vector<8xf32>
    %24 = vector.multi_reduction <add>, %23, %cst_7 [1] : vector<8x32xf32> to vector<8xf32>
    %25 = vector.shape_cast %24 : vector<8xf32> to vector<8x1xf32>
    %26 = arith.divf %25, %19 : vector<8x1xf32>
    %27 = arith.subf %22, %26 : vector<8x1xf32>
    %c8_i32 = arith.constant 8 : i32
    %28 = arith.muli %arg0, %c8_i32 : i32
    %29 = tpu.iota {dimensions = array<i32: 0>} : vector<8x1xi32>
    %30 = vector.broadcast %28 : i32 to vector<8x1xi32>
    %31 = arith.addi %30, %29 : vector<8x1xi32>
    %c0_8 = arith.constant 0 : index
    %32 = memref.load %arg2[%c0_8] : memref<1xi32, #tpu.memory_space<smem>>
    %33 = vector.broadcast %32 : i32 to vector<8x1xi32>
    %34 = arith.cmpi slt, %31, %33 : vector<8x1xi32>
    %cst_9 = arith.constant 0.000000e+00 : f32
    %35 = vector.broadcast %cst_9 : f32 to vector<8x1xf32>
    %36 = arith.select %34, %27, %35 : vector<8x1xi1>, vector<8x1xf32>
    %37 = vector.shape_cast %36 : vector<8x1xf32> to vector<1x8x1xf32>
    %cst_10 = arith.constant dense<0.000000e+00> : vector<1xf32>
    %38 = vector.multi_reduction <add>, %37, %cst_10 [1, 2] : vector<1x8x1xf32> to vector<1xf32>
    %39 = vector.shape_cast %38 : vector<1xf32> to vector<1x1x1xf32>
    %40 = vector.extract %39[0, 0, 0] : f32 from vector<1x1x1xf32>
    %41 = vector.broadcast %40 : f32 to vector<1x1x1xf32>
    %c0_11 = arith.constant 0 : index
    %c0_12 = arith.constant 0 : index
    %c0_13 = arith.constant 0 : index
    %42 = vector.load %arg5[%c0_11, %c0_12, %c0_13] : memref<1x1x1xf32, #tpu.memory_space<vmem>>, vector<1x1x1xf32>
    tpu.vector_store %arg5[%c0_11, %c0_12, %c0_13], %41 {strides = array<i32>} : memref<1x1x1xf32, #tpu.memory_space<vmem>>, vector<1x1x1xf32>,
    return
  }
  func.func @transform_0(%arg0: i32) -> i32 {
    %c0_i32 = arith.constant 0 : i32
    %c0_i32_0 = arith.constant 0 : i32
    return %c0_i32 : i32
  }
  func.func @transform_1(%arg0: i32) -> i32 {
    %c0_i32 = arith.constant 0 : i32
    %c0_i32_0 = arith.constant 0 : i32
    return %c0_i32 : i32
  }
  func.func @transform_2(%arg0: i32) -> (i32, i32) {
    %c0_i32 = arith.constant 0 : i32
    %c0_i32_0 = arith.constant 0 : i32
    return %arg0, %c0_i32 : i32, i32
  }
  func.func @transform_3(%arg0: i32) -> (i32, i32) {
    %c0_i32 = arith.constant 0 : i32
    %c0_i32_0 = arith.constant 0 : i32
    return %arg0, %c0_i32 : i32, i32
  }
  func.func @transform_4(%arg0: i32) -> (i32, i32, i32) {
    %c0_i32 = arith.constant 0 : i32
    %c0_i32_0 = arith.constant 0 : i32
    %c0_i32_1 = arith.constant 0 : i32
    return %arg0, %c0_i32, %c0_i32_0 : i32, i32, i32
  }
}

</mosaic_0001>

<llo_original>
// kernel: tpu_custom_call.1
$region0: #{tpu_custom_call.1}
  #allocation0 [shape = 'u32[]', space=smem, size = 0x4, offset = 0x4, fixed_abs, tag = 'smem constant byte address 0x4 - core index']
  #allocation1 [shape = 'u32[144,128]{1,0:T(1,128)}', space=vmem, size = 0x12000, scoped, tag = 'internal scratch']
  #allocation2 [shape = 's32[1]{0:T(128)S(6)}', space=smem, size = 0x200, scoped, tag = 'scoped memory for tpu_custom_call.1']
  %s0 = inlined_call_operand.vmem [shape: f32[2], index: 0, kind: input, shape index: {}]
  %s1 = inlined_call_operand.<no memory space> [shape: s32[1], index: 1, kind: input, shape index: {}]
  %s2 = inlined_call_operand.hbm [shape: f32[20,32], index: 2, kind: input, shape index: {}]
  %s3 = inlined_call_operand.hbm [shape: f32[20,32], index: 3, kind: input, shape index: {}]
  %s4 = inlined_call_operand.vmem [shape: f32[3,1,1], index: 4, kind: output, shape index: {}]
  %s5 = sld [smem:[#allocation0]]
  $region61: #{tpu_custom_call.1} parent=0
    _
  %s7 = ssub.s32 1, %s5
  %s8 = scalar_select 0, %s7, %s5
  %9 = sst [smem:[#allocation2]] %s1
  $region1: #{tpu_custom_call.1} parent=0
    #allocation3 [shape = 'u8[512]{0}', space=smem, size = 0x200, scoped, tag = 'input window, operand 0, single buffered']
    #allocation4 [shape = 's32[2]{0}', space=sflag, size = 0x8, scoped, tag = 'scoped memory for tpu_custom_call.1']
    #allocation5 [shape = 's32[2]{0}', space=sflag, size = 0x8, scoped, tag = 'scoped memory for tpu_custom_call.1']
    #allocation6 [shape = 'u8[8192]{0}', space=vmem, size = 0x2000, scoped, tag = 'input window, operand 2']
    #allocation7 [shape = 'u8[8192]{0}', space=vmem, size = 0x2000, scoped, tag = 'input window, operand 3']
    #allocation8 [shape = 's32[2]{0}', space=sflag, size = 0x8, scoped, tag = 'scoped memory for tpu_custom_call.1']
    %10 = vsyncpa [#allocation5], 0
    %11 = vsyncpa [#allocation4], 0
    %s12 = scalar_lea.sflag [#allocation4], 1
    %13 = vsyncpa %s12, 0
    %14 = vsyncpa [#allocation8], 0
    %s15 = scalar_lea.sflag [#allocation8], 1
    %16 = vsyncpa %s15, 0
    loop: start=0, step=1, limit=5
    $region2: #{tpu_custom_call.1} parent=1 // loop_pre_header
      _
    $region3: #{tpu_custom_call.1} parent=1 // loop_header
      %s18 = sphi 0, %s22
      %p19 = scmp.ge.s32.totalorder %s18, 5
      %s26 = sphi 0, %s26
      %s28 = sphi 0, %s26
      %s29 = sphi 0, %s28
      %s43 = sphi 0, %s29
      %s47 = sphi 0, %s47
      %s49 = sphi 0, %s47
      %s50 = sphi 0, %s49
      %s64 = sphi 0, %s50
      %s70 = sphi 0, %s72
      %s73 = sphi 0, %s70
      %s74 = sphi 0, %s73
      %s90 = sphi 0, %s74
      %s96 = sphi 0, %s98
      %s99 = sphi 0, %s96
      %s100 = sphi 0, %s99
      %s116 = sphi 0, %s100
      %s122 = sphi 0, %s124
      %s125 = sphi 0, %s122
      %s126 = sphi 0, %s125
      %s142 = sphi 0, %s126
    $region4: #{tpu_custom_call.1} parent=1 // loop_header_branch
      %21 = sbr.rel (%p19) target = $region8
    $region5: #{tpu_custom_call.1} parent=1 // loop_body
      %s23 = ssub.s32 %s18, 1
      %s24 = ssub.s32 %s18, 2
      %s25 = sadd.s32 %s18, 1
      %s27 = sadd.s32 %s26, 1
      %p30 = scmp.eq.s32.totalorder %s18, 2
      %p31 = scmp.ne.s32.totalorder %s26, %s28
      %p32 = scmp.eq.s32.totalorder %s18, 0
      %p33 = por %p31, %p32
      %p34 = scmp.ne.s32.totalorder %s26, %s28
      %p35 = scmp.eq.s32.totalorder %s23, 2
      %p36 = por %p34, %p35
      %p37 = scmp.ne.s32.totalorder %s28, %s29
      %p38 = scmp.eq.s32.totalorder %s23, 0
      %p39 = por %p37, %p38
      %p40 = scmp.ne.s32.totalorder %s28, %s29
      %p41 = scmp.eq.s32.totalorder %s24, 2
      %p42 = por %p40, %p41
      %p44 = scmp.ne.s32.totalorder %s29, %s43
      %p45 = scmp.eq.s32.totalorder %s24, 0
      %p46 = por %p44, %p45
      %s48 = sadd.s32 %s47, 1
      %p51 = scmp.eq.s32.totalorder %s18, 2
      %p52 = scmp.ne.s32.totalorder %s47, %s49
      %p53 = scmp.eq.s32.totalorder %s18, 0
      %p54 = por %p52, %p53
      %p55 = scmp.ne.s32.totalorder %s47, %s49
      %p56 = scmp.eq.s32.totalorder %s23, 2
      %p57 = por %p55, %p56
      %p58 = scmp.ne.s32.totalorder %s49, %s50
      %p59 = scmp.eq.s32.totalorder %s23, 0
      %p60 = por %p58, %p59
      %p61 = scmp.ne.s32.totalorder %s49, %s50
      %p62 = scmp.eq.s32.totalorder %s24, 2
      %p63 = por %p61, %p62
      %p65 = scmp.ne.s32.totalorder %s50, %s64
      %p66 = scmp.eq.s32.totalorder %s24, 0
      %p67 = por %p65, %p66
      %s68 = ssub.s32 %s18, %s25
      %p69 = scmp.eq.s32.totalorder %s68, 0
      %s71 = sadd.s32 %s70, 1
      %s72 = scalar_select %p69, %s70, %s71
      %p75 = pneg %p69
      %p76 = scmp.eq.s32.totalorder %s18, 2
      %p77 = por %p75, %p76
      %p78 = scmp.ne.s32.totalorder %s70, %s73
      %p79 = scmp.eq.s32.totalorder %s18, 0
      %p80 = por %p78, %p79
      %p81 = scmp.ne.s32.totalorder %s70, %s73
      %p82 = scmp.eq.s32.totalorder %s23, 2
      %p83 = por %p81, %p82
      %p84 = scmp.ne.s32.totalorder %s73, %s74
      %p85 = scmp.eq.s32.totalorder %s23, 0
      %p86 = por %p84, %p85
      %p87 = scmp.ne.s32.totalorder %s73, %s74
      %p88 = scmp.eq.s32.totalorder %s24, 2
      %p89 = por %p87, %p88
      %p91 = scmp.ne.s32.totalorder %s74, %s90
      %p92 = scmp.eq.s32.totalorder %s24, 0
      %p93 = por %p91, %p92
      %s94 = ssub.s32 %s18, %s25
      %p95 = scmp.eq.s32.totalorder %s94, 0
      %s97 = sadd.s32 %s96, 1
      %s98 = scalar_select %p95, %s96, %s97
      %p101 = pneg %p95
      %p102 = scmp.eq.s32.totalorder %s18, 2
      %p103 = por %p101, %p102
      %p104 = scmp.ne.s32.totalorder %s96, %s99
      %p105 = scmp.eq.s32.totalorder %s18, 0
      %p106 = por %p104, %p105
      %p107 = scmp.ne.s32.totalorder %s96, %s99
      %p108 = scmp.eq.s32.totalorder %s23, 2
      %p109 = por %p107, %p108
      %p110 = scmp.ne.s32.totalorder %s99, %s100
      %p111 = scmp.eq.s32.totalorder %s23, 0
      %p112 = por %p110, %p111
      %p113 = scmp.ne.s32.totalorder %s99, %s100
      %p114 = scmp.eq.s32.totalorder %s24, 2
      %p115 = por %p113, %p114
      %p117 = scmp.ne.s32.totalorder %s100, %s116
      %p118 = scmp.eq.s32.totalorder %s24, 0
      %p119 = por %p117, %p118
      %s120 = ssub.s32 %s18, %s25
      %p121 = scmp.eq.s32.totalorder %s120, 0
      %s123 = sadd.s32 %s122, 1
      %s124 = scalar_select %p121, %s122, %s123
      %p127 = pneg %p121
      %p128 = scmp.eq.s32.totalorder %s18, 2
      %p129 = por %p127, %p128
      %p130 = scmp.ne.s32.totalorder %s122, %s125
      %p131 = scmp.eq.s32.totalorder %s18, 0
      %p132 = por %p130, %p131
      %p133 = scmp.ne.s32.totalorder %s122, %s125
      %p134 = scmp.eq.s32.totalorder %s23, 2
      %p135 = por %p133, %p134
      %p136 = scmp.ne.s32.totalorder %s125, %s126
      %p137 = scmp.eq.s32.totalorder %s23, 0
      %p138 = por %p136, %p137
      %p139 = scmp.ne.s32.totalorder %s125, %s126
      %p140 = scmp.eq.s32.totalorder %s24, 2
      %p141 = por %p139, %p140
      %p143 = scmp.ne.s32.totalorder %s126, %s142
      %p144 = scmp.eq.s32.totalorder %s24, 0
      %p145 = por %p143, %p144
      %p146 = scmp.le.s32.totalorder 1, %s18
      %p147 = scmp.lt.s32.totalorder %s18, 4
      %p148 = pnand %p146, %p147
      %p149 = pneg %p148
      // Predicated region
      $region9: #{tpu_custom_call.1} parent=5 // pred_check
        _
      $region10: #{tpu_custom_call.1} parent=5 // pred_check_branch
        %151 = sbr.rel (%p148) target = $region12
      $region11: #{tpu_custom_call.1} parent=5 // pred_region
        %s152 = ssub.s32 %s18, 1
        // Predicated region
        $region13: #{tpu_custom_call.1} parent=11 // pred_check
          %p153 = pneg %p39
        $region14: #{tpu_custom_call.1} parent=11 // pred_check_branch
          %155 = sbr.rel (%p153) target = $region16
        $region15: #{tpu_custom_call.1} parent=11 // pred_region
          %s157 = ssub.s32 16, 16
          %158 = vsyncadd [#allocation5], %s157
          %s160 = sshll.u32 %s0, 4
          %s161 = int_to_ptr.vmem [resolvable:$true] %s160
          %163 = dma.vmem_to_smem %s161, 16, [#allocation3], [#allocation5]
        $region16: #{tpu_custom_call.1} parent=11 // pred_fallthru
          _
        // Predicated region
        $region17: #{tpu_custom_call.1} parent=11 // pred_check
          %p164 = pneg %p60
        $region18: #{tpu_custom_call.1} parent=11 // pred_check_branch
          %166 = sbr.rel (%p164) target = $region20
        $region19: #{tpu_custom_call.1} parent=11 // pred_region
          _
        $region20: #{tpu_custom_call.1} parent=11 // pred_fallthru
          _
      $region12: #{tpu_custom_call.1} parent=5 // pred_fallthru
        _
      %p167 = scmp.lt.s32.totalorder %s18, 3
      // Predicated region
      $region21: #{tpu_custom_call.1} parent=5 // pred_check
        %p168 = pneg %p167
      $region22: #{tpu_custom_call.1} parent=5 // pred_check_branch
        %170 = sbr.rel (%p168) target = $region24
      $region23: #{tpu_custom_call.1} parent=5 // pred_region
        // Predicated region
        $region25: #{tpu_custom_call.1} parent=23 // pred_check
          %p171 = pneg %p80
        $region26: #{tpu_custom_call.1} parent=23 // pred_check_branch
          %173 = sbr.rel (%p171) target = $region28
        $region27: #{tpu_custom_call.1} parent=23 // pred_region
          %s174 = sand.u32 %s70, 1
          %s175 = scalar_lea.sflag [#allocation4], %s174
          %s176 = sand.u32 %s70, 1
          %s177 = smul.addr %s176, 8
          %s178 = scalar_lea.vmem [#allocation6], %s177
          %s180 = ssub.s32 128, 128
          %181 = vsyncadd %s175, %s180
          %s182 = smul.addr %s18, 128
          %s183 = scalar_lea.hbm %s2, %s182
          %s185 = sshll.u32 %s178, 4
          %s186 = int_to_ptr.vmem [resolvable:$true] %s185
          %188 = dma.hbm_to_vmem [thread:$0]  %s183, 128, %s186, %s175
        $region28: #{tpu_custom_call.1} parent=23 // pred_fallthru
          _
        // Predicated region
        $region29: #{tpu_custom_call.1} parent=23 // pred_check
          %p189 = pneg %p106
        $region30: #{tpu_custom_call.1} parent=23 // pred_check_branch
          %191 = sbr.rel (%p189) target = $region32
        $region31: #{tpu_custom_call.1} parent=23 // pred_region
          %s192 = sand.u32 %s96, 1
          %s193 = scalar_lea.sflag [#allocation8], %s192
          %s194 = sand.u32 %s96, 1
          %s195 = smul.addr %s194, 8
          %s196 = scalar_lea.vmem [#allocation7], %s195
          %s198 = ssub.s32 128, 128
          %199 = vsyncadd %s193, %s198
          %s200 = smul.addr %s18, 128
          %s201 = scalar_lea.hbm %s3, %s200
          %s203 = sshll.u32 %s196, 4
          %s204 = int_to_ptr.vmem [resolvable:$true] %s203
          %206 = dma.hbm_to_vmem [thread:$0]  %s201, 128, %s204, %s193
        $region32: #{tpu_custom_call.1} parent=23 // pred_fallthru
          _
      $region24: #{tpu_custom_call.1} parent=5 // pred_fallthru
        _
      %p207 = scmp.le.s32.totalorder 1, %s18
      %p208 = scmp.lt.s32.totalorder %s18, 4
      %p209 = pnand %p207, %p208
      %p210 = pneg %p209
      // Predicated region
      $region33: #{tpu_custom_call.1} parent=5 // pred_check
        _
      $region34: #{tpu_custom_call.1} parent=5 // pred_check_branch
        %212 = sbr.rel (%p209) target = $region36
      $region35: #{tpu_custom_call.1} parent=5 // pred_region
        %s213 = ssub.s32 %s18, 1
        // Predicated region
        $region37: #{tpu_custom_call.1} parent=35 // pred_check
          %p214 = pneg %p39
        $region38: #{tpu_custom_call.1} parent=35 // pred_check_branch
          %216 = sbr.rel (%p214) target = $region40
        $region39: #{tpu_custom_call.1} parent=35 // pred_region
          %217 = dma.done [#allocation5], 16
        $region40: #{tpu_custom_call.1} parent=35 // pred_fallthru
          _
        %s218 = sand.u32 %s73, 1
        %s219 = scalar_lea.sflag [#allocation4], %s218
        %s220 = sand.u32 %s73, 1
        %s221 = smul.addr %s220, 8
        %s222 = scalar_lea.vmem [#allocation6], %s221
        // Predicated region
        $region41: #{tpu_custom_call.1} parent=35 // pred_check
          %p223 = pneg %p86
        $region42: #{tpu_custom_call.1} parent=35 // pred_check_branch
          %225 = sbr.rel (%p223) target = $region44
        $region43: #{tpu_custom_call.1} parent=35 // pred_region
          %226 = dma.done %s219, 128
        $region44: #{tpu_custom_call.1} parent=35 // pred_fallthru
          _
        %s227 = sand.u32 %s99, 1
        %s228 = scalar_lea.sflag [#allocation8], %s227
        %s229 = sand.u32 %s99, 1
        %s230 = smul.addr %s229, 8
        %s231 = scalar_lea.vmem [#allocation7], %s230
        // Predicated region
        $region45: #{tpu_custom_call.1} parent=35 // pred_check
          %p232 = pneg %p112
        $region46: #{tpu_custom_call.1} parent=35 // pred_check_branch
          %234 = sbr.rel (%p232) target = $region48
        $region47: #{tpu_custom_call.1} parent=35 // pred_region
          %235 = dma.done %s228, 128
        $region48: #{tpu_custom_call.1} parent=35 // pred_fallthru
          _
        %236 = sfence
        %p237 = pneg %p39
        %p238 = pneg %p36
        %p239 = pneg %p60
        %p240 = pneg %p57
        %s241 = sand.u32 %s73, 1
        %s242 = scalar_lea.sflag [#allocation4], %s241
        %s243 = sand.u32 %s73, 1
        %s244 = smul.addr %s243, 8
        %s245 = scalar_lea.vmem [#allocation6], %s244
        %p246 = pneg %p86
        %p247 = pneg %p83
        %s248 = sand.u32 %s99, 1
        %s249 = scalar_lea.sflag [#allocation8], %s248
        %s250 = sand.u32 %s99, 1
        %s251 = smul.addr %s250, 8
        %s252 = scalar_lea.vmem [#allocation7], %s251
        %p253 = pneg %p112
        %p254 = pneg %p109
        %p255 = pneg %p138
        %p256 = pneg %p135
        %p257 = scmp.lt.s32.totalorder %s23, 2
        %s258 = scalar_select %p257, %s23, 2
        %s259 = scalar_lea.vmem %s4, %s258
        %p260 = scmp.lt.s32.totalorder %s23, 2
        %s261 = scalar_select %p260, %s23, 2
        %s262 = scalar_lea.vmem %s4, %s261
        %s263 = sld [smem:[#allocation3]]
        %s264 = sld [smem:[#allocation3 + $0x1]]
        %v265 = vld [vmem:[%s222] sm:$0xff]
        %v266 = vstv %s263
        %v267 = vmul.f32 %v265, %v266
        %v268 = vld [vmem:[%s231] sm:$0xff]
        %v269 = vstv %s264
        %v270 = vmul.f32 %v268, %v269
        %vm271 = vcmask 261120
        %v272 = vsel %vm271, %v270, -inf
        %273 = vmax.xlane.f32.xlu0 %v272
        %v274 = vpop.xlane.xlu0 %273
        %v275 = vsub.f32 %v270, %v274
        %v276 = vsel %vm271, %v267, -inf
        %277 = vmax.xlane.f32.xlu0 %v276
        %v278 = vpop.xlane.xlu0 %277
        %v279 = vsub.f32 %v267, %v278
        %v280 = vmul.f32 %v275, 1.442695
        %v281 = vpow.pop %v280
        %v282 = vmul.f32 %v279, 1.442695
        %v283 = vpow.pop %v282
        %v284 = vsel %vm271, %v281, 0.0
        %285 = vadd.xlane.f32.xlu0 %v284
        %v286 = vpop.xlane.xlu0 %285
        %v287 = vsel %vm271, %v283, 0.0
        %288 = vadd.xlane.f32.xlu0 %v287
        %v289 = vpop.xlane.xlu0 %288
        %v290 = vlog2.pop %v289
        %v291 = vmul.f32 %v290, 0.6931472
        %v292 = vmul.f32 %v281, %v279
        %v293 = vsel %vm271, %v292, 0.0
        %294 = vadd.xlane.f32.xlu0 %v293
        %v295 = vpop.xlane.xlu0 %294
        %v296 = vrcp.pop %v286
        %v297 = vmul.f32 %v295, %v296
        %v298 = vsub.f32 %v291, %v297
        %s299 = smul.u32 %s23, 8
        %v300 = vlaneseq
        %v301 = vshrl.u32 %v300, 7
        %v302 = vstv %s299
        %v303 = vadd.s32 %v302, %v301
        %s304 = sld [smem:[#allocation2]]
        %v305 = vstv %s304
        %vm306 = vcmp.lt.s32.totalorder %v303, %v305
        %v307 = vsel %vm306, %v298, 0.0
        %vm308 = vcmask 7168
        %v309 = vsel %vm308, %v307, 0.0
        %310 = vadd.xlane.f32.xlu0 %v309
        %v311 = vpop.xlane.xlu0 %310
        %v312 = vrot.slane %v311, 4
        %v313 = vadd.f32 %v311, %v312
        %v314 = vrot.slane %v313, 2
        %v315 = vadd.f32 %v313, %v314
        %v316 = vrot.slane %v315, 1
        %v317 = vadd.f32 %v315, %v316
        %s318 = vtos %v317
        %v319 = vstv %s318
        %vm320 = vcmask 0
        %321 = vst.msk [vmem:[%s262] sm:$0x1] %vm320, %v319
        %p322 = scmp.lt.s32.totalorder %s23, 2
        %s323 = scalar_select %p322, %s23, 2
        %s324 = scalar_lea.vmem %s4, %s323
        // Predicated region
        $region49: #{tpu_custom_call.1} parent=35 // pred_check
          %p325 = pneg %p135
        $region50: #{tpu_custom_call.1} parent=35 // pred_check_branch
          %327 = sbr.rel (%p325) target = $region52
        $region51: #{tpu_custom_call.1} parent=35 // pred_region
          _
        $region52: #{tpu_custom_call.1} parent=35 // pred_fallthru
          _
      $region36: #{tpu_custom_call.1} parent=5 // pred_fallthru
        _
      %p328 = scmp.le.s32.totalorder 2, %s18
      // Predicated region
      $region53: #{tpu_custom_call.1} parent=5 // pred_check
        %p329 = pneg %p328
      $region54: #{tpu_custom_call.1} parent=5 // pred_check_branch
        %331 = sbr.rel (%p329) target = $region56
      $region55: #{tpu_custom_call.1} parent=5 // pred_region
        %s332 = ssub.s32 %s18, 2
        // Predicated region
        $region57: #{tpu_custom_call.1} parent=55 // pred_check
          %p333 = pneg %p141
        $region58: #{tpu_custom_call.1} parent=55 // pred_check_branch
          %335 = sbr.rel (%p333) target = $region60
        $region59: #{tpu_custom_call.1} parent=55 // pred_region
          %p336 = scmp.lt.s32.totalorder %s24, 2
          %s337 = scalar_select %p336, %s24, 2
          %s338 = scalar_lea.vmem %s4, %s337
        $region60: #{tpu_custom_call.1} parent=55 // pred_fallthru
          _
      $region56: #{tpu_custom_call.1} parent=5 // pred_fallthru
        _
    $region6: #{tpu_custom_call.1} parent=1 // loop_footer
      %s22 = sadd.s32 1, %s18
    $region7: #{tpu_custom_call.1} parent=1 // loop_footer_branch
      %17 = sbr.rel target = $region3
    $region8: #{tpu_custom_call.1} parent=1 // loop_exit
      _
    %339 = vsyncpa [#allocation4], 1
    %s340 = scalar_lea.sflag [#allocation4], 1
    %341 = vsyncpa %s340, 1
    %342 = vsyncpa [#allocation8], 1
    %s343 = scalar_lea.sflag [#allocation8], 1
    %344 = vsyncpa %s343, 1
    %345 = vsyncpa [#allocation5], 1
    %s346 = scalar_lea.sflag [#allocation5], 1
    %347 = vsyncpa %s346, 1

</llo_original>
